<compile_context>
chip_gen: v6e
topology: v6e:2x2x1
jax: 0.10.0
libtpu: 0.0.40
codegen_flags: <defaults>
</compile_context>

<pallas_src>
import functools

import jax
import jax.numpy as jnp
from jax.experimental import pallas as pl
from jax.experimental.pallas import tpu as pltpu


def _activation(name, x):
    if name == "relu":
        return jnp.maximum(x, 0.0)
    if name == "sigmoid":
        return jax.nn.sigmoid(x)
    if name == "tanh":
        return jnp.tanh(x)
    raise ValueError(f"unknown activation {name}")


def _round_up(x, m):
    return ((x + m - 1) // m) * m


def _padded_vmem_bytes(shape, itemsize):
    """Bytes one VMEM buffer of `shape` occupies after (8,128) tile padding."""
    shape = tuple(shape)
    if len(shape) == 1:
        shape = (1,) + shape
    lead = 1
    for d in shape[:-2]:
        lead *= int(d)
    r, c = int(shape[-2]), int(shape[-1])
    return lead * _round_up(max(r, 1), 8) * _round_up(max(c, 1), 128) * itemsize


def _mlp_kernel(*refs, num_layers, activation, final_mxu, mxu_dtype):
    """refs = (xT_ref, w0, b0, w1, b1, ..., w_{L-1}, b_{L-1}, o_ref).

    Compute runs in "transposed" space: activations are (features, TB) so the batch
    tile rides the 128-lane axis.  x arrives pre-transposed -> no XLU transpose.
    """
    xT_ref = refs[0]
    o_ref = refs[-1]
    param_refs = refs[1:-1]

    ht = xT_ref[...]  # (d_in, TB) f32, lane-dense

    # Hidden stack: h <- act(W @ h + b); W kept in PyTorch (out, in) layout, b is (out, 1).
    for l in range(num_layers - 1):
        w = param_refs[2 * l][...]                      # (out, in), f32 or bf16
        b = param_refs[2 * l + 1][...]                  # (out, 1), f32
        rhs = ht if mxu_dtype is None else ht.astype(mxu_dtype)
        ht = jnp.dot(w, rhs, preferred_element_type=jnp.float32) + b
        ht = _activation(activation, ht)                # VPU/EUP work stays f32

    w_last = param_refs[-2][...]
    b_last = param_refs[-1][...]                        # (1, 1), f32
    if final_mxu:
        # Large `nodes`: (1, nodes) x (nodes, TB) MXU dot keeps the VALU slot free.
        rhs = ht if mxu_dtype is None else ht.astype(mxu_dtype)
        y = jnp.dot(w_last, rhs, preferred_element_type=jnp.float32) + b_last   # (1, TB)
    else:
        # Small `nodes`: VPU multiply + sublane reduction (MXU-free, lane-dense).
        y = jnp.sum(ht * w_last, axis=0, keepdims=True) + b_last                # (1, TB)
    o_ref[...] = y.astype(o_ref.dtype)


def simple_ann_forward(x, params, activation="relu", block_b=None, use_bf16_mxu=None):
    """x: (B, D_in) f32.  params: list of (W, b) per Linear, PyTorch layout
    (W: (out, in), b: (out,)).  Returns (B, 1), matching SimpleANN.forward."""
    num_layers = len(params)
    B, d_in = x.shape
    nodes = params[0][0].shape[0]

    if use_bf16_mxu is None:
        use_bf16_mxu = nodes >= 256           # bf16 MXU only in the compute-bound regime
    mxu_dtype = jnp.bfloat16 if use_bf16_mxu else None
    final_mxu = nodes >= 256                  # MXU final layer only for wide hidden dims

    # ---- kernel-side parameter layout --------------------------------------------
    #   hidden layers: W (out, in)  [bf16 if use_bf16_mxu], b (out, 1) f32
    #   final layer  : (1, nodes) for MXU path, (nodes, 1) for VPU path; b (1, 1) f32
    flat_params = []
    for l, (w, b) in enumerate(params):
        if l < num_layers - 1:
            w_k = w.astype(mxu_dtype) if mxu_dtype is not None else w.astype(jnp.float32)
            flat_params.append(w_k)
            flat_params.append(b.reshape(-1, 1).astype(jnp.float32))
        else:
            if final_mxu:
                w_k = w.reshape(1, -1)
                w_k = w_k.astype(mxu_dtype) if mxu_dtype is not None else w_k.astype(jnp.float32)
            else:
                w_k = w.reshape(1, -1).T.astype(jnp.float32)     # (nodes, 1)
            flat_params.append(w_k)
            flat_params.append(b.reshape(1, 1).astype(jnp.float32))

    # ---- per-generation VMEM budget & batch-tile sizing ---------------------------
    try:
        vmem_capacity = int(pltpu.get_tpu_info().vmem_capacity_bytes)
    except Exception:
        vmem_capacity = 64 << 20              # conservative: v7x per-TC VMEM
    vmem_budget = int(0.6 * vmem_capacity)

    # Padded param footprint (assume 2 buffers in the worst case so the fallback fits).
    param_vmem_1buf = sum(_padded_vmem_bytes(p.shape, p.dtype.itemsize) for p in flat_params)
    fixed = 2 * param_vmem_1buf + (2 << 20)   # params + misc compiler headroom

    # Bytes of VMEM per unit of TB (lane column):
    max_width = max([d_in] + [int(w.shape[0]) for (w, _) in params[:-1]] + [1])
    per_col = (
        2 * _round_up(d_in, 8) * 4            # x tile, double-buffered
        + 2 * 8 * 4                           # (1, TB) output tile (pads to 8 sublanes), 2 bufs
        + 3 * _round_up(max_width, 8) * 4     # activation intermediates / spill headroom
    )

    avail = max(vmem_budget - fixed, per_col * 128)
    tb_cap = max(128, (avail // per_col) // 128 * 128)
    if block_b is not None:
        tb_cap = min(tb_cap, _round_up(block_b, 128))
    tb = int(max(128, min(tb_cap, 16384, _round_up(B, 128))))

    b_pad = _round_up(B, tb)
    num_tiles = b_pad // tb

    # Pre-transpose + pad x in the wrapper: (B, D_in) -> (D_in, b_pad), lane-dense tiles.
    x_t = x.astype(jnp.float32).T
    if b_pad != B:
        x_t = jnp.pad(x_t, ((0, 0), (0, b_pad - B)))

    vmem_need = fixed + per_col * tb
    vmem_limit = int(min(int(0.9 * vmem_capacity),
                         min(vmem_budget, max(32 << 20, int(1.25 * vmem_need)))))
    vmem_limit = max(vmem_limit, int(1.1 * vmem_need))
    vmem_limit = min(vmem_limit, int(0.9 * vmem_capacity))

    # ---- advisory cost estimate ----------------------------------------------------
    dims = [(int(w.shape[1]), int(w.shape[0])) for (w, _) in params]   # (in, out)
    flops = 2 * b_pad * sum(i * o for i, o in dims)
    transcendentals = 0 if activation == "relu" else b_pad * sum(o for _, o in dims[:-1])
    param_bytes = sum(int(p.size) * p.dtype.itemsize for p in flat_params)
    bytes_accessed = int(x_t.size) * 4 + param_bytes + b_pad * 4

    kernel = functools.partial(
        _mlp_kernel, num_layers=num_layers, activation=activation,
        final_mxu=final_mxu, mxu_dtype=mxu_dtype)

    def _call(single_buffer_params):
        pkw = {"pipeline_mode": pl.Buffered(1)} if single_buffer_params else {}
        in_specs = [pl.BlockSpec((d_in, tb), lambda i: (0, i))]
        # Weights/biases: full block, constant index_map -> DMA'd once, VMEM-resident.
        in_specs += [pl.BlockSpec(p.shape, lambda i: (0, 0), **pkw) for p in flat_params]
        out_spec = pl.BlockSpec((1, tb), lambda i: (0, i))
        return pl.pallas_call(
            kernel,
            out_shape=jax.ShapeDtypeStruct((1, b_pad), x.dtype),
            grid=(num_tiles,),
            in_specs=in_specs,
            out_specs=out_spec,
            compiler_params=pltpu.CompilerParams(
                # TODO(synk): switch to pltpu.CORE_PARALLEL on v7x once verified safe
                # on single-TC chips (v5e/v6e).
                dimension_semantics=(pltpu.PARALLEL,),
                vmem_limit_bytes=vmem_limit,
            ),
            cost_estimate=pl.CostEstimate(
                flops=int(flops),
                transcendentals=int(transcendentals),
                bytes_accessed=int(bytes_accessed),
            ),
        )(x_t, *flat_params)

    try:
        out = _call(single_buffer_params=True)
    except Exception:
        # Fallback if this JAX version rejects Buffered(1) / pipeline_mode on params.
        out = _call(single_buffer_params=False)

    # (1, b_pad) lane-dense slab -> (B, 1); padded columns are garbage, sliced off.
    return out[0, :B].reshape(B, 1)


def init_simple_ann_params(key, input_dim, hidden_layers, nodes):
    """Deterministic init mimicking nn.Linear default: U(-1/sqrt(fan_in), 1/sqrt(fan_in)).
    Weights stored in PyTorch (out, in) layout."""
    dims = [input_dim] + [nodes] * hidden_layers + [1]
    params = []
    for i in range(len(dims) - 1):
        fan_in, fan_out = dims[i], dims[i + 1]
        key, kw, kb = jax.random.split(key, 3)
        bound = 1.0 / jnp.sqrt(jnp.float32(fan_in))
        w = jax.random.uniform(kw, (fan_out, fan_in), jnp.float32, -bound, bound)
        b = jax.random.uniform(kb, (fan_out,), jnp.float32, -bound, bound)
        params.append((w, b))
    return params


def simple_ann_reference(x, params, activation="relu"):
    h = x
    n = len(params)
    for l, (w, b) in enumerate(params):
        h = h @ w.T + b
        if l < n - 1:
            h = _activation(activation, h)
    return h


if __name__ == "__main__":
    key = jax.random.PRNGKey(0)
    kx, kp = jax.random.split(key)

    # SimpleANN(input_dim=16, hidden_layers=2, nodes=32, activation='relu')
    batch, input_dim, hidden_layers, nodes = 8, 16, 2, 32
    activation = "relu"

    x = jax.random.normal(kx, (batch, input_dim), jnp.float32)
    params = init_simple_ann_params(kp, input_dim, hidden_layers, nodes)

    out = simple_ann_forward(x, params, activation)
    out = jax.block_until_ready(out)

    ref = simple_ann_reference(x, params, activation)
    assert out.shape == (batch, 1), out.shape
    assert jnp.allclose(out, ref, atol=1e-4, rtol=1e-4), (out, ref)

    print("KERNEL_OK")
</pallas_src>

<mosaic_0001>
module attributes {stable_mosaic.version = 11 : i64} {
  func.func @_mlp_kernel(%arg0: i32, %arg1: memref<16x128xf32, #tpu.memory_space<vmem>>, %arg2: memref<32x16xf32, #tpu.memory_space<vmem>>, %arg3: memref<32x1xf32, #tpu.memory_space<vmem>>, %arg4: memref<32x32xf32, #tpu.memory_space<vmem>>, %arg5: memref<32x1xf32, #tpu.memory_space<vmem>>, %arg6: memref<32x1xf32, #tpu.memory_space<vmem>>, %arg7: memref<1x1xf32, #tpu.memory_space<vmem>>, %arg8: memref<1x128xf32, #tpu.memory_space<vmem>>) attributes {dimension_semantics = [#tpu.dimension_semantics<parallel>], iteration_bounds = array<i64: 1>, scalar_prefetch = 0 : i64, scratch_operands = 0 : i64, tpu.core_type = #tpu.core_type<tc>, window_params = [{transform_indices = @transform_0, window_bounds = array<i64: 16, 128>}, {pipeline_mode = #tpu.pipeline_mode<synchronous>, transform_indices = @transform_1, window_bounds = array<i64: 32, 16>}, {pipeline_mode = #tpu.pipeline_mode<synchronous>, transform_indices = @transform_2, window_bounds = array<i64: 32, 1>}, {pipeline_mode = #tpu.pipeline_mode<synchronous>, transform_indices = @transform_3, window_bounds = array<i64: 32, 32>}, {pipeline_mode = #tpu.pipeline_mode<synchronous>, transform_indices = @transform_4, window_bounds = array<i64: 32, 1>}, {pipeline_mode = #tpu.pipeline_mode<synchronous>, transform_indices = @transform_5, window_bounds = array<i64: 32, 1>}, {pipeline_mode = #tpu.pipeline_mode<synchronous>, transform_indices = @transform_6, window_bounds = array<i64: 1, 1>}, {transform_indices = @transform_7, window_bounds = array<i64: 1, 128>}]} {
    %c0 = arith.constant 0 : index
    %c0_0 = arith.constant 0 : index
    %0 = vector.load %arg1[%c0, %c0_0] : memref<16x128xf32, #tpu.memory_space<vmem>>, vector<16x128xf32>
    %c0_1 = arith.constant 0 : index
    %c0_2 = arith.constant 0 : index
    %1 = vector.load %arg2[%c0_1, %c0_2] : memref<32x16xf32, #tpu.memory_space<vmem>>, vector<32x16xf32>
    %c0_3 = arith.constant 0 : index
    %c0_4 = arith.constant 0 : index
    %2 = vector.load %arg3[%c0_3, %c0_4] : memref<32x1xf32, #tpu.memory_space<vmem>>, vector<32x1xf32>
    %cst = arith.constant dense<0.000000e+00> : vector<32x128xf32>
    %3 = tpu.matmul %1, %0, %cst {dimension_numbers = #tpu.dot_dimension_numbers<[1], [0], [0], [1], [0, 0, 1, 1], [], []>} : vector<32x16xf32>, vector<16x128xf32>, vector<32x128xf32> -> vector<32x128xf32>
    %4 = vector.broadcast %2 : vector<32x1xf32> to vector<32x128xf32>
    %5 = arith.addf %3, %4 : vector<32x128xf32>
    %cst_5 = arith.constant 0.000000e+00 : f32
    %6 = vector.broadcast %cst_5 : f32 to vector<32x128xf32>
    %7 = arith.maximumf %5, %6 : vector<32x128xf32>
    %c0_6 = arith.constant 0 : index
    %c0_7 = arith.constant 0 : index
    %8 = vector.load %arg4[%c0_6, %c0_7] : memref<32x32xf32, #tpu.memory_space<vmem>>, vector<32x32xf32>
    %c0_8 = arith.constant 0 : index
    %c0_9 = arith.constant 0 : index
    %9 = vector.load %arg5[%c0_8, %c0_9] : memref<32x1xf32, #tpu.memory_space<vmem>>, vector<32x1xf32>
    %cst_10 = arith.constant dense<0.000000e+00> : vector<32x128xf32>
    %10 = tpu.matmul %8, %7, %cst_10 {dimension_numbers = #tpu.dot_dimension_numbers<[1], [0], [0], [1], [0, 0, 1, 1], [], []>} : vector<32x32xf32>, vector<32x128xf32>, vector<32x128xf32> -> vector<32x128xf32>
    %11 = vector.broadcast %9 : vector<32x1xf32> to vector<32x128xf32>
    %12 = arith.addf %10, %11 : vector<32x128xf32>
    %cst_11 = arith.constant 0.000000e+00 : f32
    %13 = vector.broadcast %cst_11 : f32 to vector<32x128xf32>
    %14 = arith.maximumf %12, %13 : vector<32x128xf32>
    %c0_12 = arith.constant 0 : index
    %c0_13 = arith.constant 0 : index
    %15 = vector.load %arg6[%c0_12, %c0_13] : memref<32x1xf32, #tpu.memory_space<vmem>>, vector<32x1xf32>
    %c0_14 = arith.constant 0 : index
    %c0_15 = arith.constant 0 : index
    %16 = vector.load %arg7[%c0_14, %c0_15] : memref<1x1xf32, #tpu.memory_space<vmem>>, vector<1x1xf32>
    %17 = vector.broadcast %15 : vector<32x1xf32> to vector<32x128xf32>
    %18 = arith.mulf %14, %17 : vector<32x128xf32>
    %cst_16 = arith.constant dense<0.000000e+00> : vector<128xf32>
    %19 = vector.multi_reduction <add>, %18, %cst_16 [0] : vector<32x128xf32> to vector<128xf32>
    %20 = vector.shape_cast %19 : vector<128xf32> to vector<1x128xf32>
    %21 = vector.broadcast %16 : vector<1x1xf32> to vector<1x128xf32>
    %22 = arith.addf %20, %21 : vector<1x128xf32>
    %c0_17 = arith.constant 0 : index
    %c0_18 = arith.constant 0 : index
    %23 = vector.load %arg8[%c0_17, %c0_18] : memref<1x128xf32, #tpu.memory_space<vmem>>, vector<1x128xf32>
    tpu.vector_store %arg8[%c0_17, %c0_18], %22 {strides = array<i32>} : memref<1x128xf32, #tpu.memory_space<vmem>>, vector<1x128xf32>,
    return
  }
  func.func @transform_0(%arg0: i32) -> (i32, i32) {
    %c0_i32 = arith.constant 0 : i32
    %c0_i32_0 = arith.constant 0 : i32
    return %c0_i32, %arg0 : i32, i32
  }
  func.func @transform_1(%arg0: i32) -> (i32, i32) {
    %c0_i32 = arith.constant 0 : i32
    %c0_i32_0 = arith.constant 0 : i32
    %c0_i32_1 = arith.constant 0 : i32
    return %c0_i32, %c0_i32_0 : i32, i32
  }
  func.func @transform_2(%arg0: i32) -> (i32, i32) {
    %c0_i32 = arith.constant 0 : i32
    %c0_i32_0 = arith.constant 0 : i32
    %c0_i32_1 = arith.constant 0 : i32
    return %c0_i32, %c0_i32_0 : i32, i32
  }
  func.func @transform_3(%arg0: i32) -> (i32, i32) {
    %c0_i32 = arith.constant 0 : i32
    %c0_i32_0 = arith.constant 0 : i32
    %c0_i32_1 = arith.constant 0 : i32
    return %c0_i32, %c0_i32_0 : i32, i32
  }
  func.func @transform_4(%arg0: i32) -> (i32, i32) {
    %c0_i32 = arith.constant 0 : i32
    %c0_i32_0 = arith.constant 0 : i32
    %c0_i32_1 = arith.constant 0 : i32
    return %c0_i32, %c0_i32_0 : i32, i32
  }
  func.func @transform_5(%arg0: i32) -> (i32, i32) {
    %c0_i32 = arith.constant 0 : i32
    %c0_i32_0 = arith.constant 0 : i32
    %c0_i32_1 = arith.constant 0 : i32
    return %c0_i32, %c0_i32_0 : i32, i32
  }
  func.func @transform_6(%arg0: i32) -> (i32, i32) {
    %c0_i32 = arith.constant 0 : i32
    %c0_i32_0 = arith.constant 0 : i32
    %c0_i32_1 = arith.constant 0 : i32
    return %c0_i32, %c0_i32_0 : i32, i32
  }
  func.func @transform_7(%arg0: i32) -> (i32, i32) {
    %c0_i32 = arith.constant 0 : i32
    %c0_i32_0 = arith.constant 0 : i32
    return %c0_i32, %arg0 : i32, i32
  }
}

module attributes {stable_mosaic.version = 11 : i64} {
  func.func @_mlp_kernel(%arg0: i32, %arg1: memref<16x128xf32, #tpu.memory_space<vmem>>, %arg2: memref<32x16xf32, #tpu.memory_space<vmem>>, %arg3: memref<32x1xf32, #tpu.memory_space<vmem>>, %arg4: memref<32x32xf32, #tpu.memory_space<vmem>>, %arg5: memref<32x1xf32, #tpu.memory_space<vmem>>, %arg6: memref<32x1xf32, #tpu.memory_space<vmem>>, %arg7: memref<1x1xf32, #tpu.memory_space<vmem>>, %arg8: memref<1x128xf32, #tpu.memory_space<vmem>>) attributes {dimension_semantics = [#tpu.dimension_semantics<parallel>], iteration_bounds = array<i64: 1>, scalar_prefetch = 0 : i64, scratch_operands = 0 : i64, tpu.core_type = #tpu.core_type<tc>, window_params = [{transform_indices = @transform_0, window_bounds = array<i64: 16, 128>}, {pipeline_mode = #tpu.pipeline_mode<synchronous>, transform_indices = @transform_1, window_bounds = array<i64: 32, 16>}, {pipeline_mode = #tpu.pipeline_mode<synchronous>, transform_indices = @transform_2, window_bounds = array<i64: 32, 1>}, {pipeline_mode = #tpu.pipeline_mode<synchronous>, transform_indices = @transform_3, window_bounds = array<i64: 32, 32>}, {pipeline_mode = #tpu.pipeline_mode<synchronous>, transform_indices = @transform_4, window_bounds = array<i64: 32, 1>}, {pipeline_mode = #tpu.pipeline_mode<synchronous>, transform_indices = @transform_5, window_bounds = array<i64: 32, 1>}, {pipeline_mode = #tpu.pipeline_mode<synchronous>, transform_indices = @transform_6, window_bounds = array<i64: 1, 1>}, {transform_indices = @transform_7, window_bounds = array<i64: 1, 128>}]} {
    %c0 = arith.constant 0 : index
    %c0_0 = arith.constant 0 : index
    %0 = vector.load %arg1[%c0, %c0_0] : memref<16x128xf32, #tpu.memory_space<vmem>>, vector<16x128xf32>
    %c0_1 = arith.constant 0 : index
    %c0_2 = arith.constant 0 : index
    %1 = vector.load %arg2[%c0_1, %c0_2] : memref<32x16xf32, #tpu.memory_space<vmem>>, vector<32x16xf32>
    %c0_3 = arith.constant 0 : index
    %c0_4 = arith.constant 0 : index
    %2 = vector.load %arg3[%c0_3, %c0_4] : memref<32x1xf32, #tpu.memory_space<vmem>>, vector<32x1xf32>
    %cst = arith.constant dense<0.000000e+00> : vector<32x128xf32>
    %3 = tpu.matmul %1, %0, %cst {dimension_numbers = #tpu.dot_dimension_numbers<[1], [0], [0], [1], [0, 0, 1, 1], [], []>} : vector<32x16xf32>, vector<16x128xf32>, vector<32x128xf32> -> vector<32x128xf32>
    %4 = vector.broadcast %2 : vector<32x1xf32> to vector<32x128xf32>
    %5 = arith.addf %3, %4 : vector<32x128xf32>
    %cst_5 = arith.constant 0.000000e+00 : f32
    %6 = vector.broadcast %cst_5 : f32 to vector<32x128xf32>
    %7 = arith.maximumf %5, %6 : vector<32x128xf32>
    %c0_6 = arith.constant 0 : index
    %c0_7 = arith.constant 0 : index
    %8 = vector.load %arg4[%c0_6, %c0_7] : memref<32x32xf32, #tpu.memory_space<vmem>>, vector<32x32xf32>
    %c0_8 = arith.constant 0 : index
    %c0_9 = arith.constant 0 : index
    %9 = vector.load %arg5[%c0_8, %c0_9] : memref<32x1xf32, #tpu.memory_space<vmem>>, vector<32x1xf32>
    %cst_10 = arith.constant dense<0.000000e+00> : vector<32x128xf32>
    %10 = tpu.matmul %8, %7, %cst_10 {dimension_numbers = #tpu.dot_dimension_numbers<[1], [0], [0], [1], [0, 0, 1, 1], [], []>} : vector<32x32xf32>, vector<32x128xf32>, vector<32x128xf32> -> vector<32x128xf32>
    %11 = vector.broadcast %9 : vector<32x1xf32> to vector<32x128xf32>
    %12 = arith.addf %10, %11 : vector<32x128xf32>
    %cst_11 = arith.constant 0.000000e+00 : f32
    %13 = vector.broadcast %cst_11 : f32 to vector<32x128xf32>
    %14 = arith.maximumf %12, %13 : vector<32x128xf32>
    %c0_12 = arith.constant 0 : index
    %c0_13 = arith.constant 0 : index
    %15 = vector.load %arg6[%c0_12, %c0_13] : memref<32x1xf32, #tpu.memory_space<vmem>>, vector<32x1xf32>
    %c0_14 = arith.constant 0 : index
    %c0_15 = arith.constant 0 : index
    %16 = vector.load %arg7[%c0_14, %c0_15] : memref<1x1xf32, #tpu.memory_space<vmem>>, vector<1x1xf32>
    %17 = vector.broadcast %15 : vector<32x1xf32> to vector<32x128xf32>
    %18 = arith.mulf %14, %17 : vector<32x128xf32>
    %cst_16 = arith.constant dense<0.000000e+00> : vector<128xf32>
    %19 = vector.multi_reduction <add>, %18, %cst_16 [0] : vector<32x128xf32> to vector<128xf32>
    %20 = vector.shape_cast %19 : vector<128xf32> to vector<1x128xf32>
    %21 = vector.broadcast %16 : vector<1x1xf32> to vector<1x128xf32>
    %22 = arith.addf %20, %21 : vector<1x128xf32>
    %c0_17 = arith.constant 0 : index
    %c0_18 = arith.constant 0 : index
    %23 = vector.load %arg8[%c0_17, %c0_18] : memref<1x128xf32, #tpu.memory_space<vmem>>, vector<1x128xf32>
    tpu.vector_store %arg8[%c0_17, %c0_18], %22 {strides = array<i32>} : memref<1x128xf32, #tpu.memory_space<vmem>>, vector<1x128xf32>,
    return
  }
  func.func @transform_0(%arg0: i32) -> (i32, i32) {
    %c0_i32 = arith.constant 0 : i32
    %c0_i32_0 = arith.constant 0 : i32
    return %c0_i32, %arg0 : i32, i32
  }
  func.func @transform_1(%arg0: i32) -> (i32, i32) {
    %c0_i32 = arith.constant 0 : i32
    %c0_i32_0 = arith.constant 0 : i32
    %c0_i32_1 = arith.constant 0 : i32
    return %c0_i32, %c0_i32_0 : i32, i32
  }
  func.func @transform_2(%arg0: i32) -> (i32, i32) {
    %c0_i32 = arith.constant 0 : i32
    %c0_i32_0 = arith.constant 0 : i32
    %c0_i32_1 = arith.constant 0 : i32
    return %c0_i32, %c0_i32_0 : i32, i32
  }
  func.func @transform_3(%arg0: i32) -> (i32, i32) {
    %c0_i32 = arith.constant 0 : i32
    %c0_i32_0 = arith.constant 0 : i32
    %c0_i32_1 = arith.constant 0 : i32
    return %c0_i32, %c0_i32_0 : i32, i32
  }
  func.func @transform_4(%arg0: i32) -> (i32, i32) {
    %c0_i32 = arith.constant 0 : i32
    %c0_i32_0 = arith.constant 0 : i32
    %c0_i32_1 = arith.constant 0 : i32
    return %c0_i32, %c0_i32_0 : i32, i32
  }
  func.func @transform_5(%arg0: i32) -> (i32, i32) {
    %c0_i32 = arith.constant 0 : i32
    %c0_i32_0 = arith.constant 0 : i32
    %c0_i32_1 = arith.constant 0 : i32
    return %c0_i32, %c0_i32_0 : i32, i32
  }
  func.func @transform_6(%arg0: i32) -> (i32, i32) {
    %c0_i32 = arith.constant 0 : i32
    %c0_i32_0 = arith.constant 0 : i32
    %c0_i32_1 = arith.constant 0 : i32
    return %c0_i32, %c0_i32_0 : i32, i32
  }
  func.func @transform_7(%arg0: i32) -> (i32, i32) {
    %c0_i32 = arith.constant 0 : i32
    %c0_i32_0 = arith.constant 0 : i32
    return %c0_i32, %arg0 : i32, i32
  }
}

</mosaic_0001>

<llo_original>
// kernel: tpu_custom_call.1
$region0: #{tpu_custom_call.1}
  #allocation0 [shape = 'u32[]', space=smem, size = 0x4, offset = 0x4, fixed_abs, tag = 'smem constant byte address 0x4 - core index']
  #allocation1 [shape = 'u32[144,128]{1,0:T(1,128)}', space=vmem, size = 0x12000, scoped, tag = 'internal scratch']
  #allocation2 [shape = 'f32[1,1]{1,0:T(1,128)S(1)}', space=vmem, size = 0x200, scoped, tag = 'scoped memory for tpu_custom_call.1']
  %s0 = inlined_call_operand.vmem [shape: f32[16,128], index: 0, kind: input, shape index: {}]
  %s1 = inlined_call_operand.vmem [shape: f32[32,16], index: 1, kind: input, shape index: {}]
  %s2 = inlined_call_operand.vmem [shape: f32[32,1], index: 2, kind: input, shape index: {}]
  %s3 = inlined_call_operand.vmem [shape: f32[32,32], index: 3, kind: input, shape index: {}]
  %s4 = inlined_call_operand.vmem [shape: f32[32,1], index: 4, kind: input, shape index: {}]
  %s5 = inlined_call_operand.vmem [shape: f32[32,1], index: 5, kind: input, shape index: {}]
  %s6 = inlined_call_operand.<no memory space> [shape: f32[1,1], index: 6, kind: input, shape index: {}]
  %s7 = inlined_call_operand.hbm [shape: f32[1,128], index: 7, kind: output, shape index: {}]
  %s8 = sld [smem:[#allocation0]]
  $region38: #{tpu_custom_call.1} parent=0
    _
  %s10 = ssub.s32 1, %s8
  %s11 = scalar_select 0, %s10, %s8
  %v12 = vstv %s6
  %13 = vst [vmem:[#allocation2] sm:$0x1] %v12
  $region1: #{tpu_custom_call.1} parent=0
    #allocation3 [shape = 'u8[512]{0}', space=vmem, size = 0x400, scoped, tag = 'output window, operand 0, single buffered']
    #allocation4 [shape = 's32[1]{0}', space=sflag, size = 0x4, scoped, tag = 'scoped memory for tpu_custom_call.1']
    %14 = vsyncpa [#allocation4], 0
    // Predicated region
    $region2: #{tpu_custom_call.1} parent=1 // pred_check
      _
    $region3: #{tpu_custom_call.1} parent=1 // pred_check_branch
      %16 = sbr.rel (0) target = $region5
    $region4: #{tpu_custom_call.1} parent=1 // pred_region
      _
    $region5: #{tpu_custom_call.1} parent=1 // pred_fallthru
      _
    // Predicated region
    $region6: #{tpu_custom_call.1} parent=1 // pred_check
      _
    $region7: #{tpu_custom_call.1} parent=1 // pred_check_branch
      %18 = sbr.rel (0) target = $region9
    $region8: #{tpu_custom_call.1} parent=1 // pred_region
      _
    $region9: #{tpu_custom_call.1} parent=1 // pred_fallthru
      _
    // Predicated region
    $region10: #{tpu_custom_call.1} parent=1 // pred_check
      _
    $region11: #{tpu_custom_call.1} parent=1 // pred_check_branch
      %20 = sbr.rel (0) target = $region13
    $region12: #{tpu_custom_call.1} parent=1 // pred_region
      _
    $region13: #{tpu_custom_call.1} parent=1 // pred_fallthru
      _
    // Predicated region
    $region14: #{tpu_custom_call.1} parent=1 // pred_check
      _
    $region15: #{tpu_custom_call.1} parent=1 // pred_check_branch
      %22 = sbr.rel (0) target = $region17
    $region16: #{tpu_custom_call.1} parent=1 // pred_region
      _
    $region17: #{tpu_custom_call.1} parent=1 // pred_fallthru
      _
    // Predicated region
    $region18: #{tpu_custom_call.1} parent=1 // pred_check
      _
    $region19: #{tpu_custom_call.1} parent=1 // pred_check_branch
      %24 = sbr.rel (0) target = $region21
    $region20: #{tpu_custom_call.1} parent=1 // pred_region
      _
    $region21: #{tpu_custom_call.1} parent=1 // pred_fallthru
      _
    // Predicated region
    $region22: #{tpu_custom_call.1} parent=1 // pred_check
      _
    $region23: #{tpu_custom_call.1} parent=1 // pred_check_branch
      %26 = sbr.rel (0) target = $region25
    $region24: #{tpu_custom_call.1} parent=1 // pred_region
      _
    $region25: #{tpu_custom_call.1} parent=1 // pred_fallthru
      _
    // Predicated region
    $region26: #{tpu_custom_call.1} parent=1 // pred_check
      _
    $region27: #{tpu_custom_call.1} parent=1 // pred_check_branch
      %28 = sbr.rel (0) target = $region29
    $region28: #{tpu_custom_call.1} parent=1 // pred_region
      _
    $region29: #{tpu_custom_call.1} parent=1 // pred_fallthru
      _
    %v29 = vld [vmem:[%s0] sm:$0xff]
    %v30 = vld [vmem:[%s0 + $0x8] sm:$0xff]
    %v31 = vld [vmem:[%s1] sm:$0xff]
    %v32 = vld [vmem:[%s1 + $0x8] sm:$0xff]
    %v33 = vld [vmem:[%s1 + $0x10] sm:$0xff]
    %v34 = vld [vmem:[%s1 + $0x18] sm:$0xff]
    %v35 = vld [vmem:[%s2] sm:$0xff]
    %v36 = vld [vmem:[%s2 + $0x8] sm:$0xff]
    %v37 = vld [vmem:[%s2 + $0x10] sm:$0xff]
    %v38 = vld [vmem:[%s2 + $0x18] sm:$0xff]
    %40 = vset.pattern.permute.xlu0 0
    %41 = vperm.xlu0 %40, %v35
    %v42 = vpop.permute.xlu0 %41
    %45 = vset.pattern.permute.xlu0 0
    %46 = vperm.xlu0 %45, %v36
    %v47 = vpop.permute.xlu0 %46
    %50 = vset.pattern.permute.xlu0 0
    %51 = vperm.xlu0 %50, %v37
    %v52 = vpop.permute.xlu0 %51
    %55 = vset.pattern.permute.xlu0 0
    %56 = vperm.xlu0 %55, %v38
    %v57 = vpop.permute.xlu0 %56
    %vm59 = vcmask 130048
    %v61 = vsel %vm59, %v31, 0
    %v64 = vsel %vm59, %v32, 0
    %v67 = vsel %vm59, %v33, 0
    %v70 = vsel %vm59, %v34, 0
    %72 = vmatprep.subr.mxu0 0.0
    %73 = vmatpush1.msra.mxu0 0.0
    %74 = vmatprep.subr.mxu0 0.0
    %75 = vmatpush1.msra.mxu0 0.0
    %76 = vmatprep.subr.mxu0 0.0
    %77 = vmatpush1.msra.mxu0 0.0
    %78 = vmatprep.subr.mxu0 0.0
    %79 = vmatpush1.msra.mxu0 0.0
    %80 = vmatprep.subr.mxu0 0.0
    %81 = vmatpush1.msra.mxu0 0.0
    %82 = vmatprep.subr.mxu0 0.0
    %83 = vmatpush1.msra.mxu0 0.0
    %84 = vmatprep.subr.mxu0 0.0
    %85 = vmatpush1.msra.mxu0 0.0
    %86 = vmatprep.subr.mxu0 0.0
    %87 = vmatpush1.msra.mxu0 0.0
    %88 = vmatprep.subr.mxu0 0.0
    %89 = vmatpush1.msra.mxu0 0.0
    %90 = vmatprep.subr.mxu0 0.0
    %91 = vmatpush1.msra.mxu0 0.0
    %92 = vmatprep.subr.mxu0 0.0
    %93 = vmatpush1.msra.mxu0 0.0
    %94 = vmatprep.subr.mxu0 0.0
    %95 = vmatpush1.msra.mxu0 0.0
    %96 = vmatprep.subr.mxu0 0.0
    %97 = vmatpush1.msra.mxu0 0.0
    %98 = vmatprep.subr.mxu0 0.0
    %99 = vmatpush1.msra.mxu0 0.0
    %100 = vmatprep.subr.mxu0 0.0
    %101 = vmatpush1.msra.mxu0 %v30
    %102 = vmatprep.subr.mxu0 0.0
    %103 = vmatpush1.msra.mxu0 %v29
    %104 = vmatprep.subr.mxu0 0.0
    %105 = vmatpush2.msra.mxu0 0.0
    %106 = vmatprep.subr.mxu0 0.0
    %107 = vmatpush2.msra.mxu0 0.0
    %108 = vmatprep.subr.mxu0 0.0
    %109 = vmatpush2.msra.mxu0 0.0
    %110 = vmatprep.subr.mxu0 0.0
    %111 = vmatpush2.msra.mxu0 0.0
    %112 = vmatprep.subr.mxu0 0.0
    %113 = vmatpush2.msra.mxu0 0.0
    %114 = vmatprep.subr.mxu0 0.0
    %115 = vmatpush2.msra.mxu0 0.0
    %116 = vmatprep.subr.mxu0 0.0
    %117 = vmatpush2.msra.mxu0 0.0
    %118 = vmatprep.subr.mxu0 0.0
    %119 = vmatpush2.msra.mxu0 0.0
    %120 = vmatprep.subr.mxu0 0.0
    %121 = vmatpush2.msra.mxu0 0.0
    %122 = vmatprep.subr.mxu0 0.0
    %123 = vmatpush2.msra.mxu0 0.0
    %124 = vmatprep.subr.mxu0 0.0
    %125 = vmatpush2.msra.mxu0 0.0
    %126 = vmatprep.subr.mxu0 0.0
    %127 = vmatpush2.msra.mxu0 0.0
    %128 = vmatprep.subr.mxu0 0.0
    %129 = vmatpush2.msra.mxu0 0.0
    %130 = vmatprep.subr.mxu0 0.0
    %131 = vmatpush2.msra.mxu0 0.0
    %132 = vmatprep.subr.mxu0 0.0
    %133 = vmatpush2.msra.mxu0 0.0
    %134 = vmatprep.subr.mxu0 0.0
    %135 = vmatpush2.msra.mxu0 0.0
    %136 = vmatprep.mubr.f32.mxu0 0.0
    %137 = vmatmul.mubr.f32.gmra.mxu0 %v61
    %v138 = vpop.f32.mrf.mxu0
    %v139 = vadd.f32 %v42, %v138
    %v140 = vpop.f32.mrf.mxu0
    %141 = vmatprep.mubr.f32.mxu0 0.0
    %142 = vmatmul.mubr.f32.gmra.mxu0 %v64
    %v143 = vpop.f32.mrf.mxu0
    %v144 = vadd.f32 %v47, %v143
    %v145 = vpop.f32.mrf.mxu0
    %146 = vmatprep.mubr.f32.mxu0 0.0
    %147 = vmatmul.mubr.f32.gmra.mxu0 %v67
    %v148 = vpop.f32.mrf.mxu0
    %v149 = vadd.f32 %v52, %v148
    %v150 = vpop.f32.mrf.mxu0
    %151 = vmatprep.mubr.f32.mxu0 0.0
    %152 = vmatmul.mubr.f32.gmra.mxu0 %v70
    %v153 = vpop.f32.mrf.mxu0
    %v154 = vadd.f32 %v57, %v153
    %v155 = vpop.f32.mrf.mxu0
    %156 = vdwg.mxu0
    %v157 = vmax.f32 %v139, 0.0
    %v158 = vmax.f32 %v144, 0.0
    %v159 = vmax.f32 %v149, 0.0
    %v160 = vmax.f32 %v154, 0.0
    %v161 = vld [vmem:[%s3] sm:$0xff]
    %v162 = vld [vmem:[%s3 + $0x8] sm:$0xff]
    %v163 = vld [vmem:[%s3 + $0x10] sm:$0xff]
    %v164 = vld [vmem:[%s3 + $0x18] sm:$0xff]
    %v165 = vld [vmem:[%s4] sm:$0xff]
    %v166 = vld [vmem:[%s4 + $0x8] sm:$0xff]
    %v167 = vld [vmem:[%s4 + $0x10] sm:$0xff]
    %v168 = vld [vmem:[%s4 + $0x18] sm:$0xff]
    %170 = vset.pattern.permute.xlu0 0
    %171 = vperm.xlu0 %170, %v165
    %v172 = vpop.permute.xlu0 %171
    %175 = vset.pattern.permute.xlu0 0
    %176 = vperm.xlu0 %175, %v166
    %v177 = vpop.permute.xlu0 %176
    %180 = vset.pattern.permute.xlu0 0
    %181 = vperm.xlu0 %180, %v167
    %v182 = vpop.permute.xlu0 %181
    %185 = vset.pattern.permute.xlu0 0
    %186 = vperm.xlu0 %185, %v168
    %v187 = vpop.permute.xlu0 %186
    %vm189 = vcmask 261120
    %v191 = vsel %vm189, %v161, 0
    %v194 = vsel %vm189, %v162, 0
    %v197 = vsel %vm189, %v163, 0
    %v200 = vsel %vm189, %v164, 0
    %202 = vmatprep.subr.mxu0 0.0
    %203 = vmatpush1.msra.mxu0 0.0
    %204 = vmatprep.subr.mxu0 0.0
    %205 = vmatpush1.msra.mxu0 0.0
    %206 = vmatprep.subr.mxu0 0.0
    %207 = vmatpush1.msra.mxu0 0.0
    %208 = vmatprep.subr.mxu0 0.0
    %209 = vmatpush1.msra.mxu0 0.0
    %210 = vmatprep.subr.mxu0 0.0
    %211 = vmatpush1.msra.mxu0 0.0
    %212 = vmatprep.subr.mxu0 0.0
    %213 = vmatpush1.msra.mxu0 0.0
    %214 = vmatprep.subr.mxu0 0.0
    %215 = vmatpush1.msra.mxu0 0.0
    %216 = vmatprep.subr.mxu0 0.0
    %217 = vmatpush1.msra.mxu0 0.0
    %218 = vmatprep.subr.mxu0 0.0
    %219 = vmatpush1.msra.mxu0 0.0
    %220 = vmatprep.subr.mxu0 0.0
    %221 = vmatpush1.msra.mxu0 0.0
    %222 = vmatprep.subr.mxu0 0.0
    %223 = vmatpush1.msra.mxu0 0.0
    %224 = vmatprep.subr.mxu0 0.0
    %225 = vmatpush1.msra.mxu0 0.0
    %226 = vmatprep.subr.mxu0 0.0
    %227 = vmatpush1.msra.mxu0 %v160
    %228 = vmatprep.subr.mxu0 0.0
    %229 = vmatpush1.msra.mxu0 %v159
    %230 = vmatprep.subr.mxu0 0.0
    %231 = vmatpush1.msra.mxu0 %v158
    %232 = vmatprep.subr.mxu0 0.0
    %233 = vmatpush1.msra.mxu0 %v157
    %234 = vmatprep.subr.mxu0 0.0
    %235 = vmatpush2.msra.mxu0 0.0
    %236 = vmatprep.subr.mxu0 0.0
    %237 = vmatpush2.msra.mxu0 0.0
    %238 = vmatprep.subr.mxu0 0.0
    %239 = vmatpush2.msra.mxu0 0.0
    %240 = vmatprep.subr.mxu0 0.0
    %241 = vmatpush2.msra.mxu0 0.0
    %242 = vmatprep.subr.mxu0 0.0
    %243 = vmatpush2.msra.mxu0 0.0
    %244 = vmatprep.subr.mxu0 0.0
    %245 = vmatpush2.msra.mxu0 0.0
    %246 = vmatprep.subr.mxu0 0.0
    %247 = vmatpush2.msra.mxu0 0.0
    %248 = vmatprep.subr.mxu0 0.0
    %249 = vmatpush2.msra.mxu0 0.0
    %250 = vmatprep.subr.mxu0 0.0
    %251 = vmatpush2.msra.mxu0 0.0
    %252 = vmatprep.subr.mxu0 0.0
    %253 = vmatpush2.msra.mxu0 0.0
    %254 = vmatprep.subr.mxu0 0.0
    %255 = vmatpush2.msra.mxu0 0.0
    %256 = vmatprep.subr.mxu0 0.0
    %257 = vmatpush2.msra.mxu0 0.0
    %258 = vmatprep.subr.mxu0 0.0
    %259 = vmatpush2.msra.mxu0 0.0
    %260 = vmatprep.subr.mxu0 0.0
    %261 = vmatpush2.msra.mxu0 0.0
    %262 = vmatprep.subr.mxu0 0.0
    %263 = vmatpush2.msra.mxu0 0.0
    %264 = vmatprep.subr.mxu0 0.0
    %265 = vmatpush2.msra.mxu0 0.0
    %266 = vmatprep.mubr.f32.mxu0 0.0
    %267 = vmatmul.mubr.f32.gmra.mxu0 %v191
    %v268 = vpop.f32.mrf.mxu0
    %v269 = vadd.f32 %v172, %v268
    %v270 = vpop.f32.mrf.mxu0
    %271 = vmatprep.mubr.f32.mxu0 0.0
    %272 = vmatmul.mubr.f32.gmra.mxu0 %v194
    %v273 = vpop.f32.mrf.mxu0
    %v274 = vadd.f32 %v177, %v273
    %v275 = vpop.f32.mrf.mxu0
    %276 = vmatprep.mubr.f32.mxu0 0.0
    %277 = vmatmul.mubr.f32.gmra.mxu0 %v197
    %v278 = vpop.f32.mrf.mxu0
    %v279 = vadd.f32 %v182, %v278
    %v280 = vpop.f32.mrf.mxu0
    %281 = vmatprep.mubr.f32.mxu0 0.0
    %282 = vmatmul.mubr.f32.gmra.mxu0 %v200
    %v283 = vpop.f32.mrf.mxu0
    %v284 = vadd.f32 %v187, %v283
    %v285 = vpop.f32.mrf.mxu0
    %286 = vdwg.mxu0
    %v287 = vmax.f32 %v269, 0.0
    %v288 = vmax.f32 %v274, 0.0
    %v289 = vmax.f32 %v279, 0.0
    %v290 = vmax.f32 %v284, 0.0
    %v291 = vld [vmem:[%s5] sm:$0xff]
    %v292 = vld [vmem:[%s5 + $0x8] sm:$0xff]
    %v293 = vld [vmem:[%s5 + $0x10] sm:$0xff]
    %v294 = vld [vmem:[%s5 + $0x18] sm:$0xff]
    %v295 = vld [vmem:[#allocation2] sm:$0x1]
    %297 = vset.pattern.permute.xlu0 0
    %298 = vperm.xlu0 %297, %v291
    %v299 = vpop.permute.xlu0 %298
    %302 = vset.pattern.permute.xlu0 0
    %303 = vperm.xlu0 %302, %v292
    %v304 = vpop.permute.xlu0 %303
    %307 = vset.pattern.permute.xlu0 0
    %308 = vperm.xlu0 %307, %v293
    %v309 = vpop.permute.xlu0 %308
    %312 = vset.pattern.permute.xlu0 0
    %313 = vperm.xlu0 %312, %v294
    %v314 = vpop.permute.xlu0 %313
    %v316 = vmul.f32 %v287, %v299
    %v317 = vmul.f32 %v288, %v304
    %v318 = vmul.f32 %v289, %v309
    %v319 = vmul.f32 %v290, %v314
    %v320 = vadd.f32 %v316, %v317
    %v321 = vadd.f32 %v320, %v318
    %v322 = vadd.f32 %v321, %v319
    %v323 = vrot.slane %v322, 4
    %v324 = vadd.f32 %v322, %v323
    %v325 = vrot.slane %v324, 2
    %v326 = vadd.f32 %v324, %v325
    %v327 = vrot.slane %v326, 1
    %v328 = vadd.f32 %v326, %v327
    %330 = vset.pattern.permute.xlu0 0
    %331 = vperm.xlu0 %330, %v295
    %v332 = vpop.permute.xlu0 %331
    %v334 = vlaneseq
    %v335 = vshrl.u32 %v334, 7
    %v336 = vsub.s32 0, %v335
    %v337 = vrot.slane %v332, %v336
    %v338 = vadd.f32 %v328, %v337
    %339 = vst [vmem:[#allocation3] sm:$0x1] %v338
    // Predicated region
    $region30: #{tpu_custom_call.1} parent=1 // pred_check
      _
    $region31: #{tpu_custom_call.1} parent=1 // pred_check_branch
      %341 = sbr.rel (0) target = $region33
    $region32: #{tpu_custom_call.1} parent=1 // pred_region
      %s343 = ssub.s32 16, 16
      %344 = vsyncadd [#allocation4], %s343
      %s346 = sshll.u32 [#allocation3], 4
      %s347 = int_to_ptr.vmem [resolvable:$true] %s346
      %349 = dma.vmem_to_hbm [thread:$0]  %s347, 16, %s7, [#allocation4]
    $region33: #{tpu_custom_call.1} parent=1 // pred_fallthru
      _
    // Predicated region
    $region34: #{tpu_custom_call.1} parent=1 // pred_check
      _
    $region35: #{tpu_custom_call.1} parent=1 // pred_check_branch
      %351 = sbr.rel (0) target = $region37
    $region36: #{tpu_custom_call.1} parent=1 // pred_region
      %352 = dma.done [#allocation4], 16
    $region37: #{tpu_custom_call.1} parent=1 // pred_fallthru
      _
    %353 = vsyncpa [#allocation4], 1

// kernel: tpu_custom_call.1
$region0: #{tpu_custom_call.1}
  #allocation0 [shape = 'u32[]', space=smem, size = 0x4, offset = 0x4, fixed_abs, tag = 'smem constant byte address 0x4 - core index']
  #allocation1 [shape = 'u32[144,128]{1,0:T(1,128)}', space=vmem, size = 0x12000, scoped, tag = 'internal scratch']
  #allocation2 [shape = 'f32[1,1]{1,0:T(1,128)S(1)}', space=vmem, size = 0x200, scoped, tag = 'scoped memory for tpu_custom_call.1']
  %s0 = inlined_call_operand.vmem [shape: f32[16,128], index: 0, kind: input, shape index: {}]
  %s1 = inlined_call_operand.vmem [shape: f32[32,16], index: 1, kind: input, shape index: {}]
  %s2 = inlined_call_operand.vmem [shape: f32[32,1], index: 2, kind: input, shape index: {}]
  %s3 = inlined_call_operand.vmem [shape: f32[32,32], index: 3, kind: input, shape index: {}]
  %s4 = inlined_call_operand.vmem [shape: f32[32,1], index: 4, kind: input, shape index: {}]
  %s5 = inlined_call_operand.vmem [shape: f32[32,1], index: 5, kind: input, shape index: {}]
  %s6 = inlined_call_operand.<no memory space> [shape: f32[1,1], index: 6, kind: input, shape index: {}]
  %s7 = inlined_call_operand.hbm [shape: f32[1,128], index: 7, kind: output, shape index: {}]
  %s8 = sld [smem:[#allocation0]]
  $region38: #{tpu_custom_call.1} parent=0
    _
  %s10 = ssub.s32 1, %s8
  %s11 = scalar_select 0, %s10, %s8
  %v12 = vstv %s6
  %13 = vst [vmem:[#allocation2] sm:$0x1] %v12
  $region1: #{tpu_custom_call.1} parent=0
    #allocation3 [shape = 'u8[512]{0}', space=vmem, size = 0x400, scoped, tag = 'output window, operand 0, single buffered']
    #allocation4 [shape = 's32[1]{0}', space=sflag, size = 0x4, scoped, tag = 'scoped memory for tpu_custom_call.1']
    %14 = vsyncpa [#allocation4], 0
    // Predicated region
    $region2: #{tpu_custom_call.1} parent=1 // pred_check
      _
    $region3: #{tpu_custom_call.1} parent=1 // pred_check_branch
      %16 = sbr.rel (0) target = $region5
    $region4: #{tpu_custom_call.1} parent=1 // pred_region
      _
    $region5: #{tpu_custom_call.1} parent=1 // pred_fallthru
      _
    // Predicated region
    $region6: #{tpu_custom_call.1} parent=1 // pred_check
      _
    $region7: #{tpu_custom_call.1} parent=1 // pred_check_branch
      %18 = sbr.rel (0) target = $region9
    $region8: #{tpu_custom_call.1} parent=1 // pred_region
      _
    $region9: #{tpu_custom_call.1} parent=1 // pred_fallthru
      _
    // Predicated region
    $region10: #{tpu_custom_call.1} parent=1 // pred_check
      _
    $region11: #{tpu_custom_call.1} parent=1 // pred_check_branch
      %20 = sbr.rel (0) target = $region13
    $region12: #{tpu_custom_call.1} parent=1 // pred_region
      _
    $region13: #{tpu_custom_call.1} parent=1 // pred_fallthru
      _
    // Predicated region
    $region14: #{tpu_custom_call.1} parent=1 // pred_check
      _
    $region15: #{tpu_custom_call.1} parent=1 // pred_check_branch
      %22 = sbr.rel (0) target = $region17
    $region16: #{tpu_custom_call.1} parent=1 // pred_region
      _
    $region17: #{tpu_custom_call.1} parent=1 // pred_fallthru
      _
    // Predicated region
    $region18: #{tpu_custom_call.1} parent=1 // pred_check
      _
    $region19: #{tpu_custom_call.1} parent=1 // pred_check_branch
      %24 = sbr.rel (0) target = $region21
    $region20: #{tpu_custom_call.1} parent=1 // pred_region
      _
    $region21: #{tpu_custom_call.1} parent=1 // pred_fallthru
      _
    // Predicated region
    $region22: #{tpu_custom_call.1} parent=1 // pred_check
      _
    $region23: #{tpu_custom_call.1} parent=1 // pred_check_branch
      %26 = sbr.rel (0) target = $region25
    $region24: #{tpu_custom_call.1} parent=1 // pred_region
      _
    $region25: #{tpu_custom_call.1} parent=1 // pred_fallthru
      _
    // Predicated region
    $region26: #{tpu_custom_call.1} parent=1 // pred_check
      _
    $region27: #{tpu_custom_call.1} parent=1 // pred_check_branch
      %28 = sbr.rel (0) target = $region29
    $region28: #{tpu_custom_call.1} parent=1 // pred_region
      _
    $region29: #{tpu_custom_call.1} parent=1 // pred_fallthru
      _
    %v29 = vld [vmem:[%s0] sm:$0xff]
    %v30 = vld [vmem:[%s0 + $0x8] sm:$0xff]
    %v31 = vld [vmem:[%s1] sm:$0xff]
    %v32 = vld [vmem:[%s1 + $0x8] sm:$0xff]
    %v33 = vld [vmem:[%s1 + $0x10] sm:$0xff]
    %v34 = vld [vmem:[%s1 + $0x18] sm:$0xff]
    %v35 = vld [vmem:[%s2] sm:$0xff]
    %v36 = vld [vmem:[%s2 + $0x8] sm:$0xff]
    %v37 = vld [vmem:[%s2 + $0x10] sm:$0xff]
    %v38 = vld [vmem:[%s2 + $0x18] sm:$0xff]
    %40 = vset.pattern.permute.xlu0 0
    %41 = vperm.xlu0 %40, %v35
    %v42 = vpop.permute.xlu0 %41
    %45 = vset.pattern.permute.xlu0 0
    %46 = vperm.xlu0 %45, %v36
    %v47 = vpop.permute.xlu0 %46
    %50 = vset.pattern.permute.xlu0 0
    %51 = vperm.xlu0 %50, %v37
    %v52 = vpop.permute.xlu0 %51
    %55 = vset.pattern.permute.xlu0 0
    %56 = vperm.xlu0 %55, %v38
    %v57 = vpop.permute.xlu0 %56
    %vm59 = vcmask 130048
    %v61 = vsel %vm59, %v31, 0
    %v64 = vsel %vm59, %v32, 0
    %v67 = vsel %vm59, %v33, 0
    %v70 = vsel %vm59, %v34, 0
    %72 = vmatprep.subr.mxu0 0.0
    %73 = vmatpush1.msra.mxu0 0.0
    %74 = vmatprep.subr.mxu0 0.0
    %75 = vmatpush1.msra.mxu0 0.0
    %76 = vmatprep.subr.mxu0 0.0
    %77 = vmatpush1.msra.mxu0 0.0
    %78 = vmatprep.subr.mxu0 0.0
    %79 = vmatpush1.msra.mxu0 0.0
    %80 = vmatprep.subr.mxu0 0.0
    %81 = vmatpush1.msra.mxu0 0.0
    %82 = vmatprep.subr.mxu0 0.0
    %83 = vmatpush1.msra.mxu0 0.0
    %84 = vmatprep.subr.mxu0 0.0
    %85 = vmatpush1.msra.mxu0 0.0
    %86 = vmatprep.subr.mxu0 0.0
    %87 = vmatpush1.msra.mxu0 0.0
    %88 = vmatprep.subr.mxu0 0.0
    %89 = vmatpush1.msra.mxu0 0.0
    %90 = vmatprep.subr.mxu0 0.0
    %91 = vmatpush1.msra.mxu0 0.0
    %92 = vmatprep.subr.mxu0 0.0
    %93 = vmatpush1.msra.mxu0 0.0
    %94 = vmatprep.subr.mxu0 0.0
    %95 = vmatpush1.msra.mxu0 0.0
    %96 = vmatprep.subr.mxu0 0.0
    %97 = vmatpush1.msra.mxu0 0.0
    %98 = vmatprep.subr.mxu0 0.0
    %99 = vmatpush1.msra.mxu0 0.0
    %100 = vmatprep.subr.mxu0 0.0
    %101 = vmatpush1.msra.mxu0 %v30
    %102 = vmatprep.subr.mxu0 0.0
    %103 = vmatpush1.msra.mxu0 %v29
    %104 = vmatprep.subr.mxu0 0.0
    %105 = vmatpush2.msra.mxu0 0.0
    %106 = vmatprep.subr.mxu0 0.0
    %107 = vmatpush2.msra.mxu0 0.0
    %108 = vmatprep.subr.mxu0 0.0
    %109 = vmatpush2.msra.mxu0 0.0
    %110 = vmatprep.subr.mxu0 0.0
    %111 = vmatpush2.msra.mxu0 0.0
    %112 = vmatprep.subr.mxu0 0.0
    %113 = vmatpush2.msra.mxu0 0.0
    %114 = vmatprep.subr.mxu0 0.0
    %115 = vmatpush2.msra.mxu0 0.0
    %116 = vmatprep.subr.mxu0 0.0
    %117 = vmatpush2.msra.mxu0 0.0
    %118 = vmatprep.subr.mxu0 0.0
    %119 = vmatpush2.msra.mxu0 0.0
    %120 = vmatprep.subr.mxu0 0.0
    %121 = vmatpush2.msra.mxu0 0.0
    %122 = vmatprep.subr.mxu0 0.0
    %123 = vmatpush2.msra.mxu0 0.0
    %124 = vmatprep.subr.mxu0 0.0
    %125 = vmatpush2.msra.mxu0 0.0
    %126 = vmatprep.subr.mxu0 0.0
    %127 = vmatpush2.msra.mxu0 0.0
    %128 = vmatprep.subr.mxu0 0.0
    %129 = vmatpush2.msra.mxu0 0.0
    %130 = vmatprep.subr.mxu0 0.0
    %131 = vmatpush2.msra.mxu0 0.0
    %132 = vmatprep.subr.mxu0 0.0
    %133 = vmatpush2.msra.mxu0 0.0
    %134 = vmatprep.subr.mxu0 0.0
    %135 = vmatpush2.msra.mxu0 0.0
    %136 = vmatprep.mubr.f32.mxu0 0.0
    %137 = vmatmul.mubr.f32.gmra.mxu0 %v61
    %v138 = vpop.f32.mrf.mxu0
    %v139 = vadd.f32 %v42, %v138
    %v140 = vpop.f32.mrf.mxu0
    %141 = vmatprep.mubr.f32.mxu0 0.0
    %142 = vmatmul.mubr.f32.gmra.mxu0 %v64
    %v143 = vpop.f32.mrf.mxu0
    %v144 = vadd.f32 %v47, %v143
    %v145 = vpop.f32.mrf.mxu0
    %146 = vmatprep.mubr.f32.mxu0 0.0
    %147 = vmatmul.mubr.f32.gmra.mxu0 %v67
    %v148 = vpop.f32.mrf.mxu0
    %v149 = vadd.f32 %v52, %v148
    %v150 = vpop.f32.mrf.mxu0
    %151 = vmatprep.mubr.f32.mxu0 0.0
    %152 = vmatmul.mubr.f32.gmra.mxu0 %v70
    %v153 = vpop.f32.mrf.mxu0
    %v154 = vadd.f32 %v57, %v153
    %v155 = vpop.f32.mrf.mxu0
    %156 = vdwg.mxu0
    %v157 = vmax.f32 %v139, 0.0
    %v158 = vmax.f32 %v144, 0.0
    %v159 = vmax.f32 %v149, 0.0
    %v160 = vmax.f32 %v154, 0.0
    %v161 = vld [vmem:[%s3] sm:$0xff]
    %v162 = vld [vmem:[%s3 + $0x8] sm:$0xff]
    %v163 = vld [vmem:[%s3 + $0x10] sm:$0xff]
    %v164 = vld [vmem:[%s3 + $0x18] sm:$0xff]
    %v165 = vld [vmem:[%s4] sm:$0xff]
    %v166 = vld [vmem:[%s4 + $0x8] sm:$0xff]
    %v167 = vld [vmem:[%s4 + $0x10] sm:$0xff]
    %v168 = vld [vmem:[%s4 + $0x18] sm:$0xff]
    %170 = vset.pattern.permute.xlu0 0
    %171 = vperm.xlu0 %170, %v165
    %v172 = vpop.permute.xlu0 %171
    %175 = vset.pattern.permute.xlu0 0
    %176 = vperm.xlu0 %175, %v166
    %v177 = vpop.permute.xlu0 %176
    %180 = vset.pattern.permute.xlu0 0
    %181 = vperm.xlu0 %180, %v167
    %v182 = vpop.permute.xlu0 %181
    %185 = vset.pattern.permute.xlu0 0
    %186 = vperm.xlu0 %185, %v168
    %v187 = vpop.permute.xlu0 %186
    %vm189 = vcmask 261120
    %v191 = vsel %vm189, %v161, 0
    %v194 = vsel %vm189, %v162, 0
    %v197 = vsel %vm189, %v163, 0
    %v200 = vsel %vm189, %v164, 0
    %202 = vmatprep.subr.mxu0 0.0
    %203 = vmatpush1.msra.mxu0 0.0
    %204 = vmatprep.subr.mxu0 0.0
    %205 = vmatpush1.msra.mxu0 0.0
    %206 = vmatprep.subr.mxu0 0.0
    %207 = vmatpush1.msra.mxu0 0.0
    %208 = vmatprep.subr.mxu0 0.0
    %209 = vmatpush1.msra.mxu0 0.0
    %210 = vmatprep.subr.mxu0 0.0
    %211 = vmatpush1.msra.mxu0 0.0
    %212 = vmatprep.subr.mxu0 0.0
    %213 = vmatpush1.msra.mxu0 0.0
    %214 = vmatprep.subr.mxu0 0.0
    %215 = vmatpush1.msra.mxu0 0.0
    %216 = vmatprep.subr.mxu0 0.0
    %217 = vmatpush1.msra.mxu0 0.0
    %218 = vmatprep.subr.mxu0 0.0
    %219 = vmatpush1.msra.mxu0 0.0
    %220 = vmatprep.subr.mxu0 0.0
    %221 = vmatpush1.msra.mxu0 0.0
    %222 = vmatprep.subr.mxu0 0.0
    %223 = vmatpush1.msra.mxu0 0.0
    %224 = vmatprep.subr.mxu0 0.0
    %225 = vmatpush1.msra.mxu0 0.0
    %226 = vmatprep.subr.mxu0 0.0
    %227 = vmatpush1.msra.mxu0 %v160
    %228 = vmatprep.subr.mxu0 0.0
    %229 = vmatpush1.msra.mxu0 %v159
    %230 = vmatprep.subr.mxu0 0.0
    %231 = vmatpush1.msra.mxu0 %v158
    %232 = vmatprep.subr.mxu0 0.0
    %233 = vmatpush1.msra.mxu0 %v157
    %234 = vmatprep.subr.mxu0 0.0
    %235 = vmatpush2.msra.mxu0 0.0
    %236 = vmatprep.subr.mxu0 0.0
    %237 = vmatpush2.msra.mxu0 0.0
    %238 = vmatprep.subr.mxu0 0.0
    %239 = vmatpush2.msra.mxu0 0.0
    %240 = vmatprep.subr.mxu0 0.0
    %241 = vmatpush2.msra.mxu0 0.0
    %242 = vmatprep.subr.mxu0 0.0
    %243 = vmatpush2.msra.mxu0 0.0
    %244 = vmatprep.subr.mxu0 0.0
    %245 = vmatpush2.msra.mxu0 0.0
    %246 = vmatprep.subr.mxu0 0.0
    %247 = vmatpush2.msra.mxu0 0.0
    %248 = vmatprep.subr.mxu0 0.0
    %249 = vmatpush2.msra.mxu0 0.0
    %250 = vmatprep.subr.mxu0 0.0
    %251 = vmatpush2.msra.mxu0 0.0
    %252 = vmatprep.subr.mxu0 0.0
    %253 = vmatpush2.msra.mxu0 0.0
    %254 = vmatprep.subr.mxu0 0.0
    %255 = vmatpush2.msra.mxu0 0.0
    %256 = vmatprep.subr.mxu0 0.0
    %257 = vmatpush2.msra.mxu0 0.0
    %258 = vmatprep.subr.mxu0 0.0
    %259 = vmatpush2.msra.mxu0 0.0
    %260 = vmatprep.subr.mxu0 0.0
    %261 = vmatpush2.msra.mxu0 0.0
    %262 = vmatprep.subr.mxu0 0.0
    %263 = vmatpush2.msra.mxu0 0.0
    %264 = vmatprep.subr.mxu0 0.0
    %265 = vmatpush2.msra.mxu0 0.0
    %266 = vmatprep.mubr.f32.mxu0 0.0
    %267 = vmatmul.mubr.f32.gmra.mxu0 %v191
    %v268 = vpop.f32.mrf.mxu0
    %v269 = vadd.f32 %v172, %v268
    %v270 = vpop.f32.mrf.mxu0
    %271 = vmatprep.mubr.f32.mxu0 0.0
    %272 = vmatmul.mubr.f32.gmra.mxu0 %v194
    %v273 = vpop.f32.mrf.mxu0
    %v274 = vadd.f32 %v177, %v273
    %v275 = vpop.f32.mrf.mxu0
    %276 = vmatprep.mubr.f32.mxu0 0.0
    %277 = vmatmul.mubr.f32.gmra.mxu0 %v197
    %v278 = vpop.f32.mrf.mxu0
    %v279 = vadd.f32 %v182, %v278
    %v280 = vpop.f32.mrf.mxu0
    %281 = vmatprep.mubr.f32.mxu0 0.0
    %282 = vmatmul.mubr.f32.gmra.mxu0 %v200
    %v283 = vpop.f32.mrf.mxu0
    %v284 = vadd.f32 %v187, %v283
    %v285 = vpop.f32.mrf.mxu0
    %286 = vdwg.mxu0
    %v287 = vmax.f32 %v269, 0.0
    %v288 = vmax.f32 %v274, 0.0
    %v289 = vmax.f32 %v279, 0.0
    %v290 = vmax.f32 %v284, 0.0
    %v291 = vld [vmem:[%s5] sm:$0xff]
    %v292 = vld [vmem:[%s5 + $0x8] sm:$0xff]
    %v293 = vld [vmem:[%s5 + $0x10] sm:$0xff]
    %v294 = vld [vmem:[%s5 + $0x18] sm:$0xff]
    %v295 = vld [vmem:[#allocation2] sm:$0x1]
    %297 = vset.pattern.permute.xlu0 0
    %298 = vperm.xlu0 %297, %v291
    %v299 = vpop.permute.xlu0 %298
    %302 = vset.pattern.permute.xlu0 0
    %303 = vperm.xlu0 %302, %v292
    %v304 = vpop.permute.xlu0 %303
    %307 = vset.pattern.permute.xlu0 0
    %308 = vperm.xlu0 %307, %v293
    %v309 = vpop.permute.xlu0 %308
    %312 = vset.pattern.permute.xlu0 0
    %313 = vperm.xlu0 %312, %v294
    %v314 = vpop.permute.xlu0 %313
    %v316 = vmul.f32 %v287, %v299
    %v317 = vmul.f32 %v288, %v304
    %v318 = vmul.f32 %v289, %v309
    %v319 = vmul.f32 %v290, %v314
    %v320 = vadd.f32 %v316, %v317
    %v321 = vadd.f32 %v320, %v318
    %v322 = vadd.f32 %v321, %v319
    %v323 = vrot.slane %v322, 4
    %v324 = vadd.f32 %v322, %v323
    %v325 = vrot.slane %v324, 2
    %v326 = vadd.f32 %v324, %v325
    %v327 = vrot.slane %v326, 1
    %v328 = vadd.f32 %v326, %v327
    %330 = vset.pattern.permute.xlu0 0
    %331 = vperm.xlu0 %330, %v295
    %v332 = vpop.permute.xlu0 %331
    %v334 = vlaneseq
    %v335 = vshrl.u32 %v334, 7
    %v336 = vsub.s32 0, %v335
    %v337 = vrot.slane %v332, %v336
    %v338 = vadd.f32 %v328, %v337
    %339 = vst [vmem:[#allocation3] sm:$0x1] %v338
    // Predicated region
    $region30: #{tpu_custom_call.1} parent=1 // pred_check
      _
    $region31: #{tpu_custom_call.1} parent=1 // pred_check_branch
      %341 = sbr.rel (0) target = $region33
    $region32: #{tpu_custom_call.1} parent=1 // pred_region
      %s343 = ssub.s32 16, 16
      %344 = vsyncadd [#allocation4], %s343
      %s346 = sshll.u32 [#allocation3], 4
      %s347 = int_to_ptr.vmem [resolvable:$true] %s346
      %349 = dma.vmem_to_hbm [thread:$0]  %s347, 16, %s7, [#allocation4]
    $region33: #{tpu_custom_call.1} parent=1 // pred_fallthru
      _
    // Predicated region
    $region34: #{tpu_custom_call.1} parent=1 // pred_check
      _
    $region35: #{tpu_custom_call.1} parent=1 // pred_check_branch
      %351 = sbr.rel (0) target = $region37
    $region36: #{tpu_custom_call.1} parent=1 // pred_region
      %352 = dma.done [#allocation4], 16
    $region37: #{tpu_custom_call.1} parent=1 // pred_fallthru
      _
    %353 = vsyncpa [#allocation4], 1

</llo_original>
